<compile_context>
chip_gen: v5e
topology: v5e:2x2
jax: 0.10.0
libtpu: 0.0.40
codegen_flags: <defaults>
</compile_context>

<pallas_src>
import functools

import numpy as np

import jax
import jax.numpy as jnp
from jax import lax
from jax.experimental import pallas as pl
from jax.experimental.pallas import tpu as pltpu


def _round_up(x, m):
    return ((x + m - 1) // m) * m


def _triplet_block_kernel(xb_ref, xt_ref, sq_row_ref, sq_col_ref,
                          t_col_ref, t_row_ref, hinge_ref, corr_ref,
                          *, n, bn, margin):
    """One grid step: bn query rows vs. all Np (padded) columns.

    xb_ref     : VMEM f32[bn, Dp]   row block of (padded) features
    xt_ref     : VMEM f32[Dp, Np]   resident transposed features
    sq_row_ref : VMEM f32[bn, 1]    ||x_i||^2 for this row block
    sq_col_ref : VMEM f32[1, Np]    ||x_j||^2 for all columns (+1e30 on pads)
    t_col_ref  : VMEM i32[bn, 1]    labels of this row block
    t_row_ref  : VMEM i32[1, Np]    labels of all columns (sentinel on pads)
    hinge_ref  : VMEM f32[bn, 1]    per-row hinge term max(0, d_ap - d_an + m)
    corr_ref   : VMEM i32[bn, 1]    per-row indicator (d_an >= d_ap)
    """
    xb = xb_ref[...]                              # (bn, Dp)
    xt = xt_ref[...]                              # (Dp, Np)

    # (bn, Np) slab of squared pairwise distances via one NN MXU matmul.
    gram = lax.dot_general(xb, xt, (((1,), (0,)), ((), ())),
                           preferred_element_type=jnp.float32)
    dist2 = sq_row_ref[...] + sq_col_ref[...] - 2.0 * gram

    # Hard mining on squared distances (clamp/sqrt are monotone, so decisions
    # are unchanged).  Padded columns: the sentinel label keeps them out of
    # the positive set; the +1e30 column norm keeps them out of the
    # hard-negative min.
    same_id = t_col_ref[...] == t_row_ref[...]    # (bn, Np)
    d_ap2 = jnp.max(jnp.where(same_id, dist2, -jnp.inf), axis=1, keepdims=True)
    d_an2 = jnp.min(jnp.where(same_id, jnp.inf, dist2), axis=1, keepdims=True)

    dist_ap = jnp.sqrt(jnp.maximum(d_ap2, 1e-12))   # (bn, 1)
    dist_an = jnp.sqrt(jnp.maximum(d_an2, 1e-12))   # (bn, 1)

    hinge = jnp.maximum(dist_ap - dist_an + margin, 0.0)
    corr = (dist_an >= dist_ap).astype(jnp.int32)

    if n % bn:  # static: padded rows exist -> zero them before the store
        row_ids = pl.program_id(0) * bn + lax.broadcasted_iota(
            jnp.int32, (bn, 1), 0)
        row_valid = row_ids < n
        hinge = jnp.where(row_valid, hinge, 0.0)
        corr = jnp.where(row_valid, corr, 0)

    hinge_ref[...] = hinge
    corr_ref[...] = corr


def _build_call(n, n_pad, d_pad, bn, margin, single_buffer_resident):
    """Build the pallas_call for the given (static) problem sizes."""

    def resident(shape):
        # Constant block index across the whole grid; single-buffer when the
        # running jax supports pl.Buffered(1) (halves the dominant VMEM use).
        if single_buffer_resident:
            return pl.BlockSpec(shape, lambda i: (0, 0),
                                pipeline_mode=pl.Buffered(1))
        return pl.BlockSpec(shape, lambda i: (0, 0))

    kernel = functools.partial(_triplet_block_kernel,
                               n=n, bn=bn, margin=float(margin))
    return pl.pallas_call(
        kernel,
        grid=(n_pad // bn,),
        in_specs=[
            pl.BlockSpec((bn, d_pad), lambda i: (i, 0)),   # row block of x
            resident((d_pad, n_pad)),                      # x^T (resident)
            pl.BlockSpec((bn, 1), lambda i: (i, 0)),       # row sq-norms
            resident((1, n_pad)),                          # col sq-norms
            pl.BlockSpec((bn, 1), lambda i: (i, 0)),       # row labels
            resident((1, n_pad)),                          # col labels
        ],
        out_specs=[
            pl.BlockSpec((bn, 1), lambda i: (i, 0)),
            pl.BlockSpec((bn, 1), lambda i: (i, 0)),
        ],
        out_shape=[
            jax.ShapeDtypeStruct((n_pad, 1), jnp.float32),
            jax.ShapeDtypeStruct((n_pad, 1), jnp.int32),
        ],
        compiler_params=pltpu.CompilerParams(
            dimension_semantics=("parallel",),
            vmem_limit_bytes=64 * 1024 * 1024),
    )


def ori_triplet_loss(inputs, targets, margin=0.3):
    """JAX/Pallas equivalent of OriTripletLoss.forward.

    inputs  : f32[N, D] feature matrix
    targets : int[N] labels
    Returns (loss, correct) like the PyTorch module.
    """
    inputs = jnp.asarray(inputs, jnp.float32)
    targets = jnp.asarray(targets, jnp.int32)
    n, d = inputs.shape

    d_pad = _round_up(d, 128)                    # lane-dense feature dim
    # 256-row blocks feed the 2x256x256 MXUs on v6e/v7x; 128 is already the
    # sweet spot for v5e's 4x128x128 MXU (and for small batches).
    bn = 256 if n >= 256 else _round_up(min(n, 128), 8)
    n_pad = _round_up(n, bn)

    # Padded, lane-dense feature matrix and its transpose (NN gram layout).
    x = jnp.zeros((n_pad, d_pad), jnp.float32).at[:n, :d].set(inputs)
    xt = jnp.zeros((d_pad, n_pad), jnp.float32).at[:d, :n].set(inputs.T)

    # Hoisted squared norms.  Padded columns get +1e30 so they never win the
    # hard-negative min; padded rows are masked in-kernel before the store.
    sq = jnp.sum(x * x, axis=1)
    col_valid = jnp.arange(n_pad) < n
    sq_row = sq.reshape(n_pad, 1)
    sq_col = jnp.where(col_valid, sq, jnp.float32(1e30)).reshape(1, n_pad)

    # Labels, padded with a sentinel that cannot collide with any real label.
    sentinel = jnp.min(targets) - jnp.int32(1)
    t = jnp.full((n_pad,), sentinel, dtype=jnp.int32).at[:n].set(targets)
    t_col = t.reshape(n_pad, 1)
    t_row = t.reshape(1, n_pad)

    args = (x, xt, sq_row, sq_col, t_col, t_row)
    try:
        hinge, corr = _build_call(n, n_pad, d_pad, bn, margin,
                                  single_buffer_resident=True)(*args)
    except Exception:
        # Fallback for jax builds that reject pl.Buffered(1); identical math.
        hinge, corr = _build_call(n, n_pad, d_pad, bn, margin,
                                  single_buffer_resident=False)(*args)

    # Padded rows were zeroed in-kernel, so full-array reductions are exact.
    loss = jnp.sum(hinge) / jnp.float32(n)
    correct = jnp.sum(corr)
    return loss, correct


def _reference_ori_triplet_loss(inputs, targets, margin=0.3):
    """Pure-numpy reference mirroring the PyTorch code."""
    x = np.asarray(inputs, np.float32)
    t = np.asarray(targets)
    n = x.shape[0]
    sq = np.power(x, 2).sum(axis=1, keepdims=True)
    dist = sq + sq.T - 2.0 * (x @ x.T)
    dist = np.sqrt(np.clip(dist, 1e-12, None))
    mask = t[:, None] == t[None, :]
    dist_ap = np.array([dist[i][mask[i]].max() for i in range(n)], np.float32)
    dist_an = np.array([dist[i][~mask[i]].min() for i in range(n)], np.float32)
    # nn.MarginRankingLoss(margin)(dist_an, dist_ap, y=1), reduction='mean'.
    loss = float(np.mean(np.maximum(dist_ap - dist_an + margin, 0.0)))
    correct = int(np.sum(dist_an >= dist_ap))
    return loss, correct


if __name__ == "__main__":
    key = jax.random.PRNGKey(0)
    batch, feat_dim = 8, 32
    margin = 0.3

    inputs = jax.random.normal(key, (batch, feat_dim), dtype=jnp.float32)
    targets = jnp.array([0, 0, 1, 1, 2, 2, 3, 3], dtype=jnp.int32)

    loss, correct = ori_triplet_loss(inputs, targets, margin=margin)
    loss = jax.block_until_ready(loss)
    correct = jax.block_until_ready(correct)

    ref_loss, ref_correct = _reference_ori_triplet_loss(
        np.asarray(inputs), np.asarray(targets), margin)

    assert np.allclose(float(loss), ref_loss, atol=1e-4, rtol=1e-4), (
        float(loss), ref_loss)
    assert int(correct) == ref_correct, (int(correct), ref_correct)
    print("KERNEL_OK")
</pallas_src>

<mosaic_0001>
module attributes {stable_mosaic.version = 11 : i64} {
  func.func @_triplet_block_kernel(%arg0: i32, %arg1: memref<8x128xf32, #tpu.memory_space<vmem>>, %arg2: memref<128x8xf32, #tpu.memory_space<vmem>>, %arg3: memref<8x1xf32, #tpu.memory_space<vmem>>, %arg4: memref<1x8xf32, #tpu.memory_space<vmem>>, %arg5: memref<8x1xi32, #tpu.memory_space<vmem>>, %arg6: memref<1x8xi32, #tpu.memory_space<vmem>>, %arg7: memref<8x1xf32, #tpu.memory_space<vmem>>, %arg8: memref<8x1xi32, #tpu.memory_space<vmem>>) attributes {dimension_semantics = [#tpu.dimension_semantics<parallel>], iteration_bounds = array<i64: 1>, scalar_prefetch = 0 : i64, scratch_operands = 0 : i64, tpu.core_type = #tpu.core_type<tc>, window_params = [{transform_indices = @transform_0, window_bounds = array<i64: 8, 128>}, {pipeline_mode = #tpu.pipeline_mode<synchronous>, transform_indices = @transform_1, window_bounds = array<i64: 128, 8>}, {transform_indices = @transform_2, window_bounds = array<i64: 8, 1>}, {pipeline_mode = #tpu.pipeline_mode<synchronous>, transform_indices = @transform_3, window_bounds = array<i64: 1, 8>}, {transform_indices = @transform_4, window_bounds = array<i64: 8, 1>}, {pipeline_mode = #tpu.pipeline_mode<synchronous>, transform_indices = @transform_5, window_bounds = array<i64: 1, 8>}, {transform_indices = @transform_6, window_bounds = array<i64: 8, 1>}, {transform_indices = @transform_7, window_bounds = array<i64: 8, 1>}]} {
    %c0 = arith.constant 0 : index
    %c0_0 = arith.constant 0 : index
    %0 = vector.load %arg1[%c0, %c0_0] : memref<8x128xf32, #tpu.memory_space<vmem>>, vector<8x128xf32>
    %c0_1 = arith.constant 0 : index
    %c0_2 = arith.constant 0 : index
    %1 = vector.load %arg2[%c0_1, %c0_2] : memref<128x8xf32, #tpu.memory_space<vmem>>, vector<128x8xf32>
    %cst = arith.constant dense<0.000000e+00> : vector<8x8xf32>
    %2 = tpu.matmul %0, %1, %cst {dimension_numbers = #tpu.dot_dimension_numbers<[1], [0], [0], [1], [0, 0, 1, 1], [], []>} : vector<8x128xf32>, vector<128x8xf32>, vector<8x8xf32> -> vector<8x8xf32>
    %c0_3 = arith.constant 0 : index
    %c0_4 = arith.constant 0 : index
    %3 = vector.load %arg3[%c0_3, %c0_4] : memref<8x1xf32, #tpu.memory_space<vmem>>, vector<8x1xf32>
    %c0_5 = arith.constant 0 : index
    %c0_6 = arith.constant 0 : index
    %4 = vector.load %arg4[%c0_5, %c0_6] : memref<1x8xf32, #tpu.memory_space<vmem>>, vector<1x8xf32>
    %5 = vector.broadcast %3 : vector<8x1xf32> to vector<8x8xf32>
    %6 = vector.broadcast %4 : vector<1x8xf32> to vector<8x8xf32>
    %7 = arith.addf %5, %6 : vector<8x8xf32>
    %cst_7 = arith.constant 2.000000e+00 : f32
    %8 = vector.broadcast %cst_7 : f32 to vector<8x8xf32>
    %9 = arith.mulf %8, %2 : vector<8x8xf32>
    %10 = arith.subf %7, %9 : vector<8x8xf32>
    %c0_8 = arith.constant 0 : index
    %c0_9 = arith.constant 0 : index
    %11 = vector.load %arg5[%c0_8, %c0_9] : memref<8x1xi32, #tpu.memory_space<vmem>>, vector<8x1xi32>
    %c0_10 = arith.constant 0 : index
    %c0_11 = arith.constant 0 : index
    %12 = vector.load %arg6[%c0_10, %c0_11] : memref<1x8xi32, #tpu.memory_space<vmem>>, vector<1x8xi32>
    %13 = vector.broadcast %11 : vector<8x1xi32> to vector<8x8xi32>
    %14 = vector.broadcast %12 : vector<1x8xi32> to vector<8x8xi32>
    %15 = arith.cmpi eq, %13, %14 : vector<8x8xi32>
    %cst_12 = arith.constant 0xFF800000 : f32
    %16 = vector.broadcast %cst_12 : f32 to vector<8x8xf32>
    %17 = arith.select %15, %10, %16 : vector<8x8xi1>, vector<8x8xf32>
    %cst_13 = arith.constant dense<0xFF800000> : vector<8xf32>
    %18 = vector.multi_reduction <maximumf>, %17, %cst_13 [1] : vector<8x8xf32> to vector<8xf32>
    %19 = vector.shape_cast %18 : vector<8xf32> to vector<8x1xf32>
    %cst_14 = arith.constant 0x7F800000 : f32
    %20 = vector.broadcast %cst_14 : f32 to vector<8x8xf32>
    %21 = arith.select %15, %20, %10 : vector<8x8xi1>, vector<8x8xf32>
    %cst_15 = arith.constant dense<0x7F800000> : vector<8xf32>
    %22 = vector.multi_reduction <minimumf>, %21, %cst_15 [1] : vector<8x8xf32> to vector<8xf32>
    %23 = vector.shape_cast %22 : vector<8xf32> to vector<8x1xf32>
    %cst_16 = arith.constant 9.99999996E-13 : f32
    %24 = vector.broadcast %cst_16 : f32 to vector<8x1xf32>
    %25 = arith.maximumf %19, %24 : vector<8x1xf32>
    %26 = math.sqrt %25 : vector<8x1xf32>
    %cst_17 = arith.constant 9.99999996E-13 : f32
    %27 = vector.broadcast %cst_17 : f32 to vector<8x1xf32>
    %28 = arith.maximumf %23, %27 : vector<8x1xf32>
    %29 = math.sqrt %28 : vector<8x1xf32>
    %30 = arith.subf %26, %29 : vector<8x1xf32>
    %cst_18 = arith.constant 3.000000e-01 : f32
    %31 = vector.broadcast %cst_18 : f32 to vector<8x1xf32>
    %32 = arith.addf %30, %31 : vector<8x1xf32>
    %cst_19 = arith.constant 0.000000e+00 : f32
    %33 = vector.broadcast %cst_19 : f32 to vector<8x1xf32>
    %34 = arith.maximumf %32, %33 : vector<8x1xf32>
    %35 = arith.cmpf oge, %29, %26 : vector<8x1xf32>
    %36 = arith.extui %35 : vector<8x1xi1> to vector<8x1xi32>
    %c0_20 = arith.constant 0 : index
    %c0_21 = arith.constant 0 : index
    %37 = vector.load %arg7[%c0_20, %c0_21] : memref<8x1xf32, #tpu.memory_space<vmem>>, vector<8x1xf32>
    tpu.vector_store %arg7[%c0_20, %c0_21], %34 {strides = array<i32>} : memref<8x1xf32, #tpu.memory_space<vmem>>, vector<8x1xf32>,
    %c0_22 = arith.constant 0 : index
    %c0_23 = arith.constant 0 : index
    %38 = vector.load %arg8[%c0_22, %c0_23] : memref<8x1xi32, #tpu.memory_space<vmem>>, vector<8x1xi32>
    tpu.vector_store %arg8[%c0_22, %c0_23], %36 {strides = array<i32>} : memref<8x1xi32, #tpu.memory_space<vmem>>, vector<8x1xi32>,
    return
  }
  func.func @transform_0(%arg0: i32) -> (i32, i32) {
    %c0_i32 = arith.constant 0 : i32
    %c0_i32_0 = arith.constant 0 : i32
    return %arg0, %c0_i32 : i32, i32
  }
  func.func @transform_1(%arg0: i32) -> (i32, i32) {
    %c0_i32 = arith.constant 0 : i32
    %c0_i32_0 = arith.constant 0 : i32
    %c0_i32_1 = arith.constant 0 : i32
    return %c0_i32, %c0_i32_0 : i32, i32
  }
  func.func @transform_2(%arg0: i32) -> (i32, i32) {
    %c0_i32 = arith.constant 0 : i32
    %c0_i32_0 = arith.constant 0 : i32
    return %arg0, %c0_i32 : i32, i32
  }
  func.func @transform_3(%arg0: i32) -> (i32, i32) {
    %c0_i32 = arith.constant 0 : i32
    %c0_i32_0 = arith.constant 0 : i32
    %c0_i32_1 = arith.constant 0 : i32
    return %c0_i32, %c0_i32_0 : i32, i32
  }
  func.func @transform_4(%arg0: i32) -> (i32, i32) {
    %c0_i32 = arith.constant 0 : i32
    %c0_i32_0 = arith.constant 0 : i32
    return %arg0, %c0_i32 : i32, i32
  }
  func.func @transform_5(%arg0: i32) -> (i32, i32) {
    %c0_i32 = arith.constant 0 : i32
    %c0_i32_0 = arith.constant 0 : i32
    %c0_i32_1 = arith.constant 0 : i32
    return %c0_i32, %c0_i32_0 : i32, i32
  }
  func.func @transform_6(%arg0: i32) -> (i32, i32) {
    %c0_i32 = arith.constant 0 : i32
    %c0_i32_0 = arith.constant 0 : i32
    return %arg0, %c0_i32 : i32, i32
  }
  func.func @transform_7(%arg0: i32) -> (i32, i32) {
    %c0_i32 = arith.constant 0 : i32
    %c0_i32_0 = arith.constant 0 : i32
    return %arg0, %c0_i32 : i32, i32
  }
}

module attributes {stable_mosaic.version = 11 : i64} {
  func.func @_triplet_block_kernel(%arg0: i32, %arg1: memref<8x128xf32, #tpu.memory_space<vmem>>, %arg2: memref<128x8xf32, #tpu.memory_space<vmem>>, %arg3: memref<8x1xf32, #tpu.memory_space<vmem>>, %arg4: memref<1x8xf32, #tpu.memory_space<vmem>>, %arg5: memref<8x1xi32, #tpu.memory_space<vmem>>, %arg6: memref<1x8xi32, #tpu.memory_space<vmem>>, %arg7: memref<8x1xf32, #tpu.memory_space<vmem>>, %arg8: memref<8x1xi32, #tpu.memory_space<vmem>>) attributes {dimension_semantics = [#tpu.dimension_semantics<parallel>], iteration_bounds = array<i64: 1>, scalar_prefetch = 0 : i64, scratch_operands = 0 : i64, tpu.core_type = #tpu.core_type<tc>, window_params = [{transform_indices = @transform_0, window_bounds = array<i64: 8, 128>}, {pipeline_mode = #tpu.pipeline_mode<synchronous>, transform_indices = @transform_1, window_bounds = array<i64: 128, 8>}, {transform_indices = @transform_2, window_bounds = array<i64: 8, 1>}, {pipeline_mode = #tpu.pipeline_mode<synchronous>, transform_indices = @transform_3, window_bounds = array<i64: 1, 8>}, {transform_indices = @transform_4, window_bounds = array<i64: 8, 1>}, {pipeline_mode = #tpu.pipeline_mode<synchronous>, transform_indices = @transform_5, window_bounds = array<i64: 1, 8>}, {transform_indices = @transform_6, window_bounds = array<i64: 8, 1>}, {transform_indices = @transform_7, window_bounds = array<i64: 8, 1>}]} {
    %c0 = arith.constant 0 : index
    %c0_0 = arith.constant 0 : index
    %0 = vector.load %arg1[%c0, %c0_0] : memref<8x128xf32, #tpu.memory_space<vmem>>, vector<8x128xf32>
    %c0_1 = arith.constant 0 : index
    %c0_2 = arith.constant 0 : index
    %1 = vector.load %arg2[%c0_1, %c0_2] : memref<128x8xf32, #tpu.memory_space<vmem>>, vector<128x8xf32>
    %cst = arith.constant dense<0.000000e+00> : vector<8x8xf32>
    %2 = tpu.matmul %0, %1, %cst {dimension_numbers = #tpu.dot_dimension_numbers<[1], [0], [0], [1], [0, 0, 1, 1], [], []>} : vector<8x128xf32>, vector<128x8xf32>, vector<8x8xf32> -> vector<8x8xf32>
    %c0_3 = arith.constant 0 : index
    %c0_4 = arith.constant 0 : index
    %3 = vector.load %arg3[%c0_3, %c0_4] : memref<8x1xf32, #tpu.memory_space<vmem>>, vector<8x1xf32>
    %c0_5 = arith.constant 0 : index
    %c0_6 = arith.constant 0 : index
    %4 = vector.load %arg4[%c0_5, %c0_6] : memref<1x8xf32, #tpu.memory_space<vmem>>, vector<1x8xf32>
    %5 = vector.broadcast %3 : vector<8x1xf32> to vector<8x8xf32>
    %6 = vector.broadcast %4 : vector<1x8xf32> to vector<8x8xf32>
    %7 = arith.addf %5, %6 : vector<8x8xf32>
    %cst_7 = arith.constant 2.000000e+00 : f32
    %8 = vector.broadcast %cst_7 : f32 to vector<8x8xf32>
    %9 = arith.mulf %8, %2 : vector<8x8xf32>
    %10 = arith.subf %7, %9 : vector<8x8xf32>
    %c0_8 = arith.constant 0 : index
    %c0_9 = arith.constant 0 : index
    %11 = vector.load %arg5[%c0_8, %c0_9] : memref<8x1xi32, #tpu.memory_space<vmem>>, vector<8x1xi32>
    %c0_10 = arith.constant 0 : index
    %c0_11 = arith.constant 0 : index
    %12 = vector.load %arg6[%c0_10, %c0_11] : memref<1x8xi32, #tpu.memory_space<vmem>>, vector<1x8xi32>
    %13 = vector.broadcast %11 : vector<8x1xi32> to vector<8x8xi32>
    %14 = vector.broadcast %12 : vector<1x8xi32> to vector<8x8xi32>
    %15 = arith.cmpi eq, %13, %14 : vector<8x8xi32>
    %cst_12 = arith.constant 0xFF800000 : f32
    %16 = vector.broadcast %cst_12 : f32 to vector<8x8xf32>
    %17 = arith.select %15, %10, %16 : vector<8x8xi1>, vector<8x8xf32>
    %cst_13 = arith.constant dense<0xFF800000> : vector<8xf32>
    %18 = vector.multi_reduction <maximumf>, %17, %cst_13 [1] : vector<8x8xf32> to vector<8xf32>
    %19 = vector.shape_cast %18 : vector<8xf32> to vector<8x1xf32>
    %cst_14 = arith.constant 0x7F800000 : f32
    %20 = vector.broadcast %cst_14 : f32 to vector<8x8xf32>
    %21 = arith.select %15, %20, %10 : vector<8x8xi1>, vector<8x8xf32>
    %cst_15 = arith.constant dense<0x7F800000> : vector<8xf32>
    %22 = vector.multi_reduction <minimumf>, %21, %cst_15 [1] : vector<8x8xf32> to vector<8xf32>
    %23 = vector.shape_cast %22 : vector<8xf32> to vector<8x1xf32>
    %cst_16 = arith.constant 9.99999996E-13 : f32
    %24 = vector.broadcast %cst_16 : f32 to vector<8x1xf32>
    %25 = arith.maximumf %19, %24 : vector<8x1xf32>
    %26 = math.sqrt %25 : vector<8x1xf32>
    %cst_17 = arith.constant 9.99999996E-13 : f32
    %27 = vector.broadcast %cst_17 : f32 to vector<8x1xf32>
    %28 = arith.maximumf %23, %27 : vector<8x1xf32>
    %29 = math.sqrt %28 : vector<8x1xf32>
    %30 = arith.subf %26, %29 : vector<8x1xf32>
    %cst_18 = arith.constant 3.000000e-01 : f32
    %31 = vector.broadcast %cst_18 : f32 to vector<8x1xf32>
    %32 = arith.addf %30, %31 : vector<8x1xf32>
    %cst_19 = arith.constant 0.000000e+00 : f32
    %33 = vector.broadcast %cst_19 : f32 to vector<8x1xf32>
    %34 = arith.maximumf %32, %33 : vector<8x1xf32>
    %35 = arith.cmpf oge, %29, %26 : vector<8x1xf32>
    %36 = arith.extui %35 : vector<8x1xi1> to vector<8x1xi32>
    %c0_20 = arith.constant 0 : index
    %c0_21 = arith.constant 0 : index
    %37 = vector.load %arg7[%c0_20, %c0_21] : memref<8x1xf32, #tpu.memory_space<vmem>>, vector<8x1xf32>
    tpu.vector_store %arg7[%c0_20, %c0_21], %34 {strides = array<i32>} : memref<8x1xf32, #tpu.memory_space<vmem>>, vector<8x1xf32>,
    %c0_22 = arith.constant 0 : index
    %c0_23 = arith.constant 0 : index
    %38 = vector.load %arg8[%c0_22, %c0_23] : memref<8x1xi32, #tpu.memory_space<vmem>>, vector<8x1xi32>
    tpu.vector_store %arg8[%c0_22, %c0_23], %36 {strides = array<i32>} : memref<8x1xi32, #tpu.memory_space<vmem>>, vector<8x1xi32>,
    return
  }
  func.func @transform_0(%arg0: i32) -> (i32, i32) {
    %c0_i32 = arith.constant 0 : i32
    %c0_i32_0 = arith.constant 0 : i32
    return %arg0, %c0_i32 : i32, i32
  }
  func.func @transform_1(%arg0: i32) -> (i32, i32) {
    %c0_i32 = arith.constant 0 : i32
    %c0_i32_0 = arith.constant 0 : i32
    %c0_i32_1 = arith.constant 0 : i32
    return %c0_i32, %c0_i32_0 : i32, i32
  }
  func.func @transform_2(%arg0: i32) -> (i32, i32) {
    %c0_i32 = arith.constant 0 : i32
    %c0_i32_0 = arith.constant 0 : i32
    return %arg0, %c0_i32 : i32, i32
  }
  func.func @transform_3(%arg0: i32) -> (i32, i32) {
    %c0_i32 = arith.constant 0 : i32
    %c0_i32_0 = arith.constant 0 : i32
    %c0_i32_1 = arith.constant 0 : i32
    return %c0_i32, %c0_i32_0 : i32, i32
  }
  func.func @transform_4(%arg0: i32) -> (i32, i32) {
    %c0_i32 = arith.constant 0 : i32
    %c0_i32_0 = arith.constant 0 : i32
    return %arg0, %c0_i32 : i32, i32
  }
  func.func @transform_5(%arg0: i32) -> (i32, i32) {
    %c0_i32 = arith.constant 0 : i32
    %c0_i32_0 = arith.constant 0 : i32
    %c0_i32_1 = arith.constant 0 : i32
    return %c0_i32, %c0_i32_0 : i32, i32
  }
  func.func @transform_6(%arg0: i32) -> (i32, i32) {
    %c0_i32 = arith.constant 0 : i32
    %c0_i32_0 = arith.constant 0 : i32
    return %arg0, %c0_i32 : i32, i32
  }
  func.func @transform_7(%arg0: i32) -> (i32, i32) {
    %c0_i32 = arith.constant 0 : i32
    %c0_i32_0 = arith.constant 0 : i32
    return %arg0, %c0_i32 : i32, i32
  }
}

</mosaic_0001>

<llo_original>
// kernel: tpu_custom_call.1
$region0: #{tpu_custom_call.1}
  #allocation0 [shape = 'u32[]', space=smem, size = 0x4, offset = 0x4, fixed_abs, tag = 'smem constant byte address 0x4 - core index']
  #allocation1 [shape = 'u32[72,128]{1,0:T(1,128)}', space=vmem, size = 0x9000, scoped, tag = 'internal scratch']
  %s0 = inlined_call_operand.vmem [shape: f32[8,128], index: 0, kind: input, shape index: {}]
  %s1 = inlined_call_operand.vmem [shape: f32[128,8], index: 1, kind: input, shape index: {}]
  %s2 = inlined_call_operand.vmem [shape: f32[8,1], index: 2, kind: input, shape index: {}]
  %s3 = inlined_call_operand.vmem [shape: f32[1,8], index: 3, kind: input, shape index: {}]
  %s4 = inlined_call_operand.vmem [shape: s32[8,1], index: 4, kind: input, shape index: {}]
  %s5 = inlined_call_operand.vmem [shape: s32[1,8], index: 5, kind: input, shape index: {}]
  %s6 = inlined_call_operand.vmem [shape: f32[8,1], index: 6, kind: output, shape index: {0}]
  %s7 = inlined_call_operand.vmem [shape: s32[8,1], index: 7, kind: output, shape index: {1}]
  %8 = xla_tuple %s6, %s7
  %s9 = sld [smem:[#allocation0]]
  $region42: #{tpu_custom_call.1} parent=0
    _
  %s11 = ssub.s32 1, %s9
  %s12 = scalar_select 0, %s11, %s9
  // Predicated region
  $region2: #{tpu_custom_call.1} parent=0 // pred_check
    _
  $region3: #{tpu_custom_call.1} parent=0 // pred_check_branch
    %14 = sbr.rel (0) target = $region5
  $region4: #{tpu_custom_call.1} parent=0 // pred_region
    _
  $region5: #{tpu_custom_call.1} parent=0 // pred_fallthru
    _
  // Predicated region
  $region6: #{tpu_custom_call.1} parent=0 // pred_check
    _
  $region7: #{tpu_custom_call.1} parent=0 // pred_check_branch
    %16 = sbr.rel (0) target = $region9
  $region8: #{tpu_custom_call.1} parent=0 // pred_region
    _
  $region9: #{tpu_custom_call.1} parent=0 // pred_fallthru
    _
  // Predicated region
  $region10: #{tpu_custom_call.1} parent=0 // pred_check
    _
  $region11: #{tpu_custom_call.1} parent=0 // pred_check_branch
    %18 = sbr.rel (0) target = $region13
  $region12: #{tpu_custom_call.1} parent=0 // pred_region
    _
  $region13: #{tpu_custom_call.1} parent=0 // pred_fallthru
    _
  // Predicated region
  $region14: #{tpu_custom_call.1} parent=0 // pred_check
    _
  $region15: #{tpu_custom_call.1} parent=0 // pred_check_branch
    %20 = sbr.rel (0) target = $region17
  $region16: #{tpu_custom_call.1} parent=0 // pred_region
    _
  $region17: #{tpu_custom_call.1} parent=0 // pred_fallthru
    _
  // Predicated region
  $region18: #{tpu_custom_call.1} parent=0 // pred_check
    _
  $region19: #{tpu_custom_call.1} parent=0 // pred_check_branch
    %22 = sbr.rel (0) target = $region21
  $region20: #{tpu_custom_call.1} parent=0 // pred_region
    _
  $region21: #{tpu_custom_call.1} parent=0 // pred_fallthru
    _
  // Predicated region
  $region22: #{tpu_custom_call.1} parent=0 // pred_check
    _
  $region23: #{tpu_custom_call.1} parent=0 // pred_check_branch
    %24 = sbr.rel (0) target = $region25
  $region24: #{tpu_custom_call.1} parent=0 // pred_region
    _
  $region25: #{tpu_custom_call.1} parent=0 // pred_fallthru
    _
  %v25 = vld [vmem:[%s0] sm:$0xff]
  %v26 = vld [vmem:[%s1] sm:$0xff]
  %v27 = vld [vmem:[%s1 + $0x8] sm:$0xff]
  %v28 = vld [vmem:[%s1 + $0x10] sm:$0xff]
  %v29 = vld [vmem:[%s1 + $0x18] sm:$0xff]
  %v30 = vld [vmem:[%s1 + $0x20] sm:$0xff]
  %v31 = vld [vmem:[%s1 + $0x28] sm:$0xff]
  %v32 = vld [vmem:[%s1 + $0x30] sm:$0xff]
  %v33 = vld [vmem:[%s1 + $0x38] sm:$0xff]
  %v34 = vld [vmem:[%s1 + $0x40] sm:$0xff]
  %v35 = vld [vmem:[%s1 + $0x48] sm:$0xff]
  %v36 = vld [vmem:[%s1 + $0x50] sm:$0xff]
  %v37 = vld [vmem:[%s1 + $0x58] sm:$0xff]
  %v38 = vld [vmem:[%s1 + $0x60] sm:$0xff]
  %v39 = vld [vmem:[%s1 + $0x68] sm:$0xff]
  %v40 = vld [vmem:[%s1 + $0x70] sm:$0xff]
  %v41 = vld [vmem:[%s1 + $0x78] sm:$0xff]
  %42 = vmatpush.msra.mxu0 %v41
  %43 = vmatpush.msra.mxu0 %v40
  %44 = vmatpush.msra.mxu0 %v39
  %45 = vmatpush.msra.mxu0 %v38
  %46 = vmatpush.msra.mxu0 %v37
  %47 = vmatpush.msra.mxu0 %v36
  %48 = vmatpush.msra.mxu0 %v35
  %49 = vmatpush.msra.mxu0 %v34
  %50 = vmatpush.msra.mxu0 %v33
  %51 = vmatpush.msra.mxu0 %v32
  %52 = vmatpush.msra.mxu0 %v31
  %53 = vmatpush.msra.mxu0 %v30
  %54 = vmatpush.msra.mxu0 %v29
  %55 = vmatpush.msra.mxu0 %v28
  %56 = vmatpush.msra.mxu0 %v27
  %57 = vmatpush.msra.mxu0 %v26
  %58 = vmatmul.f32.gmra.mxu0 %v25
  %v59 = vpop.f32.mrf.mxu0
  %v60 = vadd.f32 0.0, %v59
  %61 = vdwg.mxu0
  %v62 = vld [vmem:[%s2] sm:$0xff]
  %v63 = vld [vmem:[%s3] sm:$0x1]
  %65 = vset.pattern.permute.xlu0 0
  %66 = vperm.xlu0 %65, %v62
  %v67 = vpop.permute.xlu0 %66
  %v70 = vperm.slane %v63, 0
  %v72 = vadd.f32 %v67, %v70
  %v73 = vmul.f32 %v60, 2.0
  %v74 = vsub.f32 %v72, %v73
  %v75 = vld [vmem:[%s4] sm:$0xff]
  %v76 = vld [vmem:[%s5] sm:$0x1]
  %77 = vset.pattern.permute.xlu0 0
  %78 = vperm.xlu0 %77, %v75
  %v79 = vpop.permute.xlu0 %78
  %v80 = vperm.slane %v76, 0
  %vm81 = vcmp.eq.s32.totalorder %v79, %v80
  %v82 = vsel %vm81, %v74, -inf
  %vm83 = vcmask 64512
  %v84 = vsel %vm83, %v82, -inf
  %85 = vmax.xlane.f32.xlu0 %v84
  %v86 = vpop.xlane.xlu0 %85
  %v87 = vsel %vm81, inf, %v74
  %v88 = vsel %vm83, %v87, inf
  %89 = vmin.xlane.f32.xlu0 %v88
  %v90 = vpop.xlane.xlu0 %89
  %v91 = vmax.f32 %v86, 1e-12
  %v92 = vrsqrt.pop %v91
  %v93 = vmul.f32 %v92, %v91
  %v94 = vmul.f32 %v93, %v92
  %v95 = vmul.f32 0.5, %v94
  %v96 = vsub.f32 1.5, %v95
  %v97 = vmul.f32 %v92, %v96
  %v98 = vmul.f32 %v91, %v97
  %vm99 = vcmp.eq.f32.partialorder %v91, inf
  %v100 = vsel %vm99, %v91, %v98
  %vm101 = vcmp.eq.f32.partialorder %v91, 0.0
  %v102 = vand.u32 %v91, 2147483648
  %v103 = vsel %vm101, %v102, %v100
  %v104 = vmax.f32 %v90, 1e-12
  %v105 = vrsqrt.pop %v104
  %v106 = vmul.f32 %v105, %v104
  %v107 = vmul.f32 %v106, %v105
  %v108 = vmul.f32 0.5, %v107
  %v109 = vsub.f32 1.5, %v108
  %v110 = vmul.f32 %v105, %v109
  %v111 = vmul.f32 %v104, %v110
  %vm112 = vcmp.eq.f32.partialorder %v104, inf
  %v113 = vsel %vm112, %v104, %v111
  %vm114 = vcmp.eq.f32.partialorder %v104, 0.0
  %v115 = vand.u32 %v104, 2147483648
  %v116 = vsel %vm114, %v115, %v113
  %v117 = vsub.f32 %v103, %v116
  %v118 = vadd.f32 %v117, 0.3
  %v119 = vmax.f32 %v118, 0.0
  %vm120 = vcmp.ge.f32.partialorder %v116, %v103
  %v121 = vsel %vm120, 1, 0
  %vm122 = vcmask 7168
  %123 = vst.msk [vmem:[%s6] sm:$0xff] %vm122, %v119
  %124 = vst.msk [vmem:[%s7] sm:$0xff] %vm122, %v121
  // Predicated region
  $region26: #{tpu_custom_call.1} parent=0 // pred_check
    _
  $region27: #{tpu_custom_call.1} parent=0 // pred_check_branch
    %126 = sbr.rel (0) target = $region29
  $region28: #{tpu_custom_call.1} parent=0 // pred_region
    _
  $region29: #{tpu_custom_call.1} parent=0 // pred_fallthru
    _
  // Predicated region
  $region30: #{tpu_custom_call.1} parent=0 // pred_check
    _
  $region31: #{tpu_custom_call.1} parent=0 // pred_check_branch
    %128 = sbr.rel (0) target = $region33
  $region32: #{tpu_custom_call.1} parent=0 // pred_region
    _
  $region33: #{tpu_custom_call.1} parent=0 // pred_fallthru
    _
  // Predicated region
  $region34: #{tpu_custom_call.1} parent=0 // pred_check
    _
  $region35: #{tpu_custom_call.1} parent=0 // pred_check_branch
    %130 = sbr.rel (0) target = $region37
  $region36: #{tpu_custom_call.1} parent=0 // pred_region
    _
  $region37: #{tpu_custom_call.1} parent=0 // pred_fallthru
    _
  // Predicated region
  $region38: #{tpu_custom_call.1} parent=0 // pred_check
    _
  $region39: #{tpu_custom_call.1} parent=0 // pred_check_branch
    %132 = sbr.rel (0) target = $region41
  $region40: #{tpu_custom_call.1} parent=0 // pred_region
    _
  $region41: #{tpu_custom_call.1} parent=0 // pred_fallthru
    _

// kernel: tpu_custom_call.1
$region0: #{tpu_custom_call.1}
  #allocation0 [shape = 'u32[]', space=smem, size = 0x4, offset = 0x4, fixed_abs, tag = 'smem constant byte address 0x4 - core index']
  #allocation1 [shape = 'u32[72,128]{1,0:T(1,128)}', space=vmem, size = 0x9000, scoped, tag = 'internal scratch']
  %s0 = inlined_call_operand.vmem [shape: f32[8,128], index: 0, kind: input, shape index: {}]
  %s1 = inlined_call_operand.vmem [shape: f32[128,8], index: 1, kind: input, shape index: {}]
  %s2 = inlined_call_operand.vmem [shape: f32[8,1], index: 2, kind: input, shape index: {}]
  %s3 = inlined_call_operand.vmem [shape: f32[1,8], index: 3, kind: input, shape index: {}]
  %s4 = inlined_call_operand.vmem [shape: s32[8,1], index: 4, kind: input, shape index: {}]
  %s5 = inlined_call_operand.vmem [shape: s32[1,8], index: 5, kind: input, shape index: {}]
  %s6 = inlined_call_operand.vmem [shape: f32[8,1], index: 6, kind: output, shape index: {0}]
  %s7 = inlined_call_operand.vmem [shape: s32[8,1], index: 7, kind: output, shape index: {1}]
  %8 = xla_tuple %s6, %s7
  %s9 = sld [smem:[#allocation0]]
  $region42: #{tpu_custom_call.1} parent=0
    _
  %s11 = ssub.s32 1, %s9
  %s12 = scalar_select 0, %s11, %s9
  // Predicated region
  $region2: #{tpu_custom_call.1} parent=0 // pred_check
    _
  $region3: #{tpu_custom_call.1} parent=0 // pred_check_branch
    %14 = sbr.rel (0) target = $region5
  $region4: #{tpu_custom_call.1} parent=0 // pred_region
    _
  $region5: #{tpu_custom_call.1} parent=0 // pred_fallthru
    _
  // Predicated region
  $region6: #{tpu_custom_call.1} parent=0 // pred_check
    _
  $region7: #{tpu_custom_call.1} parent=0 // pred_check_branch
    %16 = sbr.rel (0) target = $region9
  $region8: #{tpu_custom_call.1} parent=0 // pred_region
    _
  $region9: #{tpu_custom_call.1} parent=0 // pred_fallthru
    _
  // Predicated region
  $region10: #{tpu_custom_call.1} parent=0 // pred_check
    _
  $region11: #{tpu_custom_call.1} parent=0 // pred_check_branch
    %18 = sbr.rel (0) target = $region13
  $region12: #{tpu_custom_call.1} parent=0 // pred_region
    _
  $region13: #{tpu_custom_call.1} parent=0 // pred_fallthru
    _
  // Predicated region
  $region14: #{tpu_custom_call.1} parent=0 // pred_check
    _
  $region15: #{tpu_custom_call.1} parent=0 // pred_check_branch
    %20 = sbr.rel (0) target = $region17
  $region16: #{tpu_custom_call.1} parent=0 // pred_region
    _
  $region17: #{tpu_custom_call.1} parent=0 // pred_fallthru
    _
  // Predicated region
  $region18: #{tpu_custom_call.1} parent=0 // pred_check
    _
  $region19: #{tpu_custom_call.1} parent=0 // pred_check_branch
    %22 = sbr.rel (0) target = $region21
  $region20: #{tpu_custom_call.1} parent=0 // pred_region
    _
  $region21: #{tpu_custom_call.1} parent=0 // pred_fallthru
    _
  // Predicated region
  $region22: #{tpu_custom_call.1} parent=0 // pred_check
    _
  $region23: #{tpu_custom_call.1} parent=0 // pred_check_branch
    %24 = sbr.rel (0) target = $region25
  $region24: #{tpu_custom_call.1} parent=0 // pred_region
    _
  $region25: #{tpu_custom_call.1} parent=0 // pred_fallthru
    _
  %v25 = vld [vmem:[%s0] sm:$0xff]
  %v26 = vld [vmem:[%s1] sm:$0xff]
  %v27 = vld [vmem:[%s1 + $0x8] sm:$0xff]
  %v28 = vld [vmem:[%s1 + $0x10] sm:$0xff]
  %v29 = vld [vmem:[%s1 + $0x18] sm:$0xff]
  %v30 = vld [vmem:[%s1 + $0x20] sm:$0xff]
  %v31 = vld [vmem:[%s1 + $0x28] sm:$0xff]
  %v32 = vld [vmem:[%s1 + $0x30] sm:$0xff]
  %v33 = vld [vmem:[%s1 + $0x38] sm:$0xff]
  %v34 = vld [vmem:[%s1 + $0x40] sm:$0xff]
  %v35 = vld [vmem:[%s1 + $0x48] sm:$0xff]
  %v36 = vld [vmem:[%s1 + $0x50] sm:$0xff]
  %v37 = vld [vmem:[%s1 + $0x58] sm:$0xff]
  %v38 = vld [vmem:[%s1 + $0x60] sm:$0xff]
  %v39 = vld [vmem:[%s1 + $0x68] sm:$0xff]
  %v40 = vld [vmem:[%s1 + $0x70] sm:$0xff]
  %v41 = vld [vmem:[%s1 + $0x78] sm:$0xff]
  %42 = vmatpush.msra.mxu0 %v41
  %43 = vmatpush.msra.mxu0 %v40
  %44 = vmatpush.msra.mxu0 %v39
  %45 = vmatpush.msra.mxu0 %v38
  %46 = vmatpush.msra.mxu0 %v37
  %47 = vmatpush.msra.mxu0 %v36
  %48 = vmatpush.msra.mxu0 %v35
  %49 = vmatpush.msra.mxu0 %v34
  %50 = vmatpush.msra.mxu0 %v33
  %51 = vmatpush.msra.mxu0 %v32
  %52 = vmatpush.msra.mxu0 %v31
  %53 = vmatpush.msra.mxu0 %v30
  %54 = vmatpush.msra.mxu0 %v29
  %55 = vmatpush.msra.mxu0 %v28
  %56 = vmatpush.msra.mxu0 %v27
  %57 = vmatpush.msra.mxu0 %v26
  %58 = vmatmul.f32.gmra.mxu0 %v25
  %v59 = vpop.f32.mrf.mxu0
  %v60 = vadd.f32 0.0, %v59
  %61 = vdwg.mxu0
  %v62 = vld [vmem:[%s2] sm:$0xff]
  %v63 = vld [vmem:[%s3] sm:$0x1]
  %65 = vset.pattern.permute.xlu0 0
  %66 = vperm.xlu0 %65, %v62
  %v67 = vpop.permute.xlu0 %66
  %v70 = vperm.slane %v63, 0
  %v72 = vadd.f32 %v67, %v70
  %v73 = vmul.f32 %v60, 2.0
  %v74 = vsub.f32 %v72, %v73
  %v75 = vld [vmem:[%s4] sm:$0xff]
  %v76 = vld [vmem:[%s5] sm:$0x1]
  %77 = vset.pattern.permute.xlu0 0
  %78 = vperm.xlu0 %77, %v75
  %v79 = vpop.permute.xlu0 %78
  %v80 = vperm.slane %v76, 0
  %vm81 = vcmp.eq.s32.totalorder %v79, %v80
  %v82 = vsel %vm81, %v74, -inf
  %vm83 = vcmask 64512
  %v84 = vsel %vm83, %v82, -inf
  %85 = vmax.xlane.f32.xlu0 %v84
  %v86 = vpop.xlane.xlu0 %85
  %v87 = vsel %vm81, inf, %v74
  %v88 = vsel %vm83, %v87, inf
  %89 = vmin.xlane.f32.xlu0 %v88
  %v90 = vpop.xlane.xlu0 %89
  %v91 = vmax.f32 %v86, 1e-12
  %v92 = vrsqrt.pop %v91
  %v93 = vmul.f32 %v92, %v91
  %v94 = vmul.f32 %v93, %v92
  %v95 = vmul.f32 0.5, %v94
  %v96 = vsub.f32 1.5, %v95
  %v97 = vmul.f32 %v92, %v96
  %v98 = vmul.f32 %v91, %v97
  %vm99 = vcmp.eq.f32.partialorder %v91, inf
  %v100 = vsel %vm99, %v91, %v98
  %vm101 = vcmp.eq.f32.partialorder %v91, 0.0
  %v102 = vand.u32 %v91, 2147483648
  %v103 = vsel %vm101, %v102, %v100
  %v104 = vmax.f32 %v90, 1e-12
  %v105 = vrsqrt.pop %v104
  %v106 = vmul.f32 %v105, %v104
  %v107 = vmul.f32 %v106, %v105
  %v108 = vmul.f32 0.5, %v107
  %v109 = vsub.f32 1.5, %v108
  %v110 = vmul.f32 %v105, %v109
  %v111 = vmul.f32 %v104, %v110
  %vm112 = vcmp.eq.f32.partialorder %v104, inf
  %v113 = vsel %vm112, %v104, %v111
  %vm114 = vcmp.eq.f32.partialorder %v104, 0.0
  %v115 = vand.u32 %v104, 2147483648
  %v116 = vsel %vm114, %v115, %v113
  %v117 = vsub.f32 %v103, %v116
  %v118 = vadd.f32 %v117, 0.3
  %v119 = vmax.f32 %v118, 0.0
  %vm120 = vcmp.ge.f32.partialorder %v116, %v103
  %v121 = vsel %vm120, 1, 0
  %vm122 = vcmask 7168
  %123 = vst.msk [vmem:[%s6] sm:$0xff] %vm122, %v119
  %124 = vst.msk [vmem:[%s7] sm:$0xff] %vm122, %v121
  // Predicated region
  $region26: #{tpu_custom_call.1} parent=0 // pred_check
    _
  $region27: #{tpu_custom_call.1} parent=0 // pred_check_branch
    %126 = sbr.rel (0) target = $region29
  $region28: #{tpu_custom_call.1} parent=0 // pred_region
    _
  $region29: #{tpu_custom_call.1} parent=0 // pred_fallthru
    _
  // Predicated region
  $region30: #{tpu_custom_call.1} parent=0 // pred_check
    _
  $region31: #{tpu_custom_call.1} parent=0 // pred_check_branch
    %128 = sbr.rel (0) target = $region33
  $region32: #{tpu_custom_call.1} parent=0 // pred_region
    _
  $region33: #{tpu_custom_call.1} parent=0 // pred_fallthru
    _
  // Predicated region
  $region34: #{tpu_custom_call.1} parent=0 // pred_check
    _
  $region35: #{tpu_custom_call.1} parent=0 // pred_check_branch
    %130 = sbr.rel (0) target = $region37
  $region36: #{tpu_custom_call.1} parent=0 // pred_region
    _
  $region37: #{tpu_custom_call.1} parent=0 // pred_fallthru
    _
  // Predicated region
  $region38: #{tpu_custom_call.1} parent=0 // pred_check
    _
  $region39: #{tpu_custom_call.1} parent=0 // pred_check_branch
    %132 = sbr.rel (0) target = $region41
  $region40: #{tpu_custom_call.1} parent=0 // pred_region
    _
  $region41: #{tpu_custom_call.1} parent=0 // pred_fallthru
    _

</llo_original>
